<compile_context>
chip_gen: v6e
topology: v6e:2x2x1
jax: 0.10.0
libtpu: 0.0.40
codegen_flags: <defaults>
</compile_context>

<pallas_src>
import math

import jax
import jax.numpy as jnp
from jax import lax
from jax.experimental import pallas as pl
from jax.experimental.pallas import tpu as pltpu


def _round_up(a, b):
    return ((a + b - 1) // b) * b


def _fused_kernel(x_ref, m_ref, o_ref):
    # x_ref : (nc_tile, K)   rows of x flattened over (t, v)
    # m_ref : (K, Kp)        fused weight M[(t, v), (q, w)] (cols lane-padded)
    # o_ref : (nc_tile, Kp)  rows of out flattened over (q, w)
    o_ref[...] = jnp.dot(
        x_ref[...], m_ref[...], preferred_element_type=jnp.float32
    ).astype(o_ref.dtype)


def make_fused_weight(T_w, A, dtype=None):
    """Fused weight M[(t, v), (q, w)] = T_w[v, t, q] * A[q, v, w].

    Returns shape (K, Kp), K = T*V, with columns zero-padded to a multiple of
    128 so kernel output stores stay lane-dense.  Depends only on parameters:
    compute it ONCE at init (or let it constant-fold under jit).
    """
    V, T, _ = T_w.shape
    K = T * V
    M = jnp.einsum('vtq,qvw->tvqw', T_w, A).reshape(K, K)
    Kp = _round_up(K, 128)
    if Kp != K:
        M = jnp.pad(M, ((0, 0), (0, Kp - K)))
    if dtype is not None:
        M = M.astype(dtype)
    return M


def _pick_nc_tile(NC, Kp, itemsize, nc_tile):
    # Sub-32-bit dtypes pack along sublanes: keep full packed sublane groups.
    row_mult = max(8, 32 // max(1, itemsize))      # 8 f32, 16 bf16, 32 int8/fp8
    if nc_tile is None:
        # ~2 MiB per x block -> ~8 MiB total double-buffered in+out, fits the
        # default scoped VMEM of v5e/v6e/v7x while being big enough that each
        # grid step is DMA-bound, not fixed-overhead-bound.
        target = max(row_mult, (2 * 1024 * 1024) // (Kp * itemsize))
        # Keep >= 4 grid steps when possible (v7x 2-TensorCore occupancy).
        per_step = _round_up(pl.cdiv(NC, 4), row_mult)
        nc_tile = min(target, max(row_mult, per_step))
    else:
        nc_tile = max(row_mult, _round_up(nc_tile, row_mult))
    if nc_tile >= NC:
        # Single full-extent block: always a legal block dim, no row padding.
        nc_tile = NC
    return nc_tile


def _x_block_spec(nc_tile, K, deep):
    if deep:
        try:  # pipeline_mode / pl.Buffered: fall back gracefully if absent.
            return pl.BlockSpec((nc_tile, K), lambda i: (i, 0),
                                pipeline_mode=pl.Buffered(3))
        except Exception:
            pass
    return pl.BlockSpec((nc_tile, K), lambda i: (i, 0))


def conv_temporal_graphical(x, T_w=None, A=None, *, fused_weight=None,
                            nc_tile=None, out_dtype=None):
    """STS-GCN ConvTemporalGraphical forward.

    x        : (N, C, T, V) activations; compute dtype is x.dtype (pass bf16
               activations to halve HBM traffic on all TPU generations).
    T_w, A   : (V, T, T) and (T, V, V) parameters, OR pass a precomputed
               `fused_weight` from make_fused_weight().
    returns  : (N, C, T, V), dtype = out_dtype (default: x.dtype).
    """
    N, C, T, V = x.shape
    K = T * V
    NC = N * C
    Kp = _round_up(K, 128)

    M = make_fused_weight(T_w, A) if fused_weight is None else fused_weight
    if M.dtype != x.dtype:
        M = M.astype(x.dtype)        # tiny (K, Kp) tensor -- negligible cost

    out_dtype = x.dtype if out_dtype is None else out_dtype

    # Flatten rows.  No row/column padding of the (large) activation tensor:
    # the ragged last row block is masked by Pallas edge handling, avoiding an
    # extra full HBM read+write pass (jnp.pad / output slice).
    x2 = x.reshape(NC, K)

    nc_tile = _pick_nc_tile(NC, Kp, x2.dtype.itemsize, nc_tile)
    grid_steps = pl.cdiv(NC, nc_tile)

    # Deeper input pipelining only pays off when blocks are small (DMA latency
    # comparable to the fixed per-step cost) and there are several steps.
    x_block_bytes = nc_tile * K * x2.dtype.itemsize
    deep = (x_block_bytes <= (1 << 20)) and (grid_steps >= 3)
    x_spec = _x_block_spec(nc_tile, K, deep)

    # VMEM footprint estimate; only bump the scoped limit for explicit huge
    # tiles (matters on v5e with its 16 MiB default), capped at v7x's 64 MiB.
    out_itemsize = jnp.dtype(out_dtype).itemsize
    vmem_est = (3 * x_block_bytes
                + 2 * nc_tile * Kp * out_itemsize
                + 2 * K * Kp * jnp.dtype(M.dtype).itemsize)
    compiler_kwargs = dict(dimension_semantics=("parallel",))
    if vmem_est > 14 * (1 << 20):
        compiler_kwargs["vmem_limit_bytes"] = int(
            min(vmem_est * 3 // 2, 64 * (1 << 20)))

    out = pl.pallas_call(
        _fused_kernel,
        out_shape=jax.ShapeDtypeStruct((NC, Kp), out_dtype),
        grid_spec=pl.GridSpec(
            grid=(grid_steps,),
            in_specs=[
                x_spec,
                # Constant index_map: the tiny weight stays VMEM-resident.
                pl.BlockSpec((K, Kp), lambda i: (0, 0)),
            ],
            out_specs=pl.BlockSpec((nc_tile, Kp), lambda i: (i, 0)),
        ),
        compiler_params=pltpu.CompilerParams(**compiler_kwargs),
    )(x2, M)

    if Kp != K:
        out = out[:, :K]
    return out.reshape(N, C, T, V)


if __name__ == "__main__":
    # Shapes consistent with the module: N=2, C=4, time_dim=8, joints=16.
    N, C, time_dim, joints_dim = 2, 4, 8, 16

    key = jax.random.PRNGKey(0)
    k_x, k_a, k_t, k_x2 = jax.random.split(key, 4)

    x = jax.random.normal(k_x, (N, C, time_dim, joints_dim), dtype=jnp.float32)

    # Deterministic param init mirroring the PyTorch __init__ (uniform(-stdv, stdv)).
    stdv_a = 1.0 / math.sqrt(joints_dim)
    A = jax.random.uniform(
        k_a, (time_dim, joints_dim, joints_dim),
        minval=-stdv_a, maxval=stdv_a, dtype=jnp.float32)
    stdv_t = 1.0 / math.sqrt(time_dim)
    T_w = jax.random.uniform(
        k_t, (joints_dim, time_dim, time_dim),
        minval=-stdv_t, maxval=stdv_t, dtype=jnp.float32)

    def reference(xx):
        y = jnp.einsum('nctv,vtq->ncqv', xx, T_w, precision=lax.Precision.HIGHEST)
        return jnp.einsum('nctv,tvw->nctw', y, A, precision=lax.Precision.HIGHEST)

    ref = reference(x)

    # Fused weight precomputed once (hoisted out of the per-forward path).
    M_f32 = make_fused_weight(T_w, A, dtype=jnp.float32)

    # --- f32 path ---------------------------------------------------------
    out = conv_temporal_graphical(x, fused_weight=M_f32)
    out = jax.block_until_ready(out)
    assert out.shape == (N, C, time_dim, joints_dim)
    assert jnp.allclose(out, ref, atol=1e-2, rtol=1e-2), "f32 mismatch vs reference"

    # --- bf16 path: caller supplies bf16 activations, bf16 output ---------
    # (no in-wrapper astype pass; HBM read AND write traffic halved)
    x_bf16 = x.astype(jnp.bfloat16)
    out_bf16 = conv_temporal_graphical(x_bf16, T_w, A)
    out_bf16 = jax.block_until_ready(out_bf16)
    assert out_bf16.dtype == jnp.bfloat16
    assert jnp.allclose(out_bf16.astype(jnp.float32), ref, atol=5e-2, rtol=5e-2), \
        "bf16 mismatch vs reference"

    # --- ragged last block + small tile (deep pipeline) path --------------
    N2, C2 = 3, 23          # NC = 69: not a multiple of the row tile
    xl = jax.random.normal(k_x2, (N2, C2, time_dim, joints_dim), dtype=jnp.float32)
    refl = reference(xl)
    outl = conv_temporal_graphical(xl, fused_weight=M_f32, nc_tile=16)
    outl = jax.block_until_ready(outl)
    assert outl.shape == (N2, C2, time_dim, joints_dim)
    assert jnp.allclose(outl, refl, atol=1e-2, rtol=1e-2), \
        "ragged/deep-pipeline mismatch vs reference"

    print("KERNEL_OK")
</pallas_src>

<mosaic_0001>
module attributes {stable_mosaic.version = 11 : i64} {
  func.func @_fused_kernel(%arg0: i32, %arg1: memref<8x128xf32, #tpu.memory_space<vmem>>, %arg2: memref<128x128xf32, #tpu.memory_space<vmem>>, %arg3: memref<8x128xf32, #tpu.memory_space<vmem>>) attributes {dimension_semantics = [#tpu.dimension_semantics<parallel>], iteration_bounds = array<i64: 1>, scalar_prefetch = 0 : i64, scratch_operands = 0 : i64, tpu.core_type = #tpu.core_type<tc>, window_params = [{transform_indices = @transform_0, window_bounds = array<i64: 8, 128>}, {pipeline_mode = #tpu.pipeline_mode<synchronous>, transform_indices = @transform_1, window_bounds = array<i64: 128, 128>}, {transform_indices = @transform_2, window_bounds = array<i64: 8, 128>}]} {
    %c0 = arith.constant 0 : index
    %c0_0 = arith.constant 0 : index
    %0 = vector.load %arg1[%c0, %c0_0] : memref<8x128xf32, #tpu.memory_space<vmem>>, vector<8x128xf32>
    %c0_1 = arith.constant 0 : index
    %c0_2 = arith.constant 0 : index
    %1 = vector.load %arg2[%c0_1, %c0_2] : memref<128x128xf32, #tpu.memory_space<vmem>>, vector<128x128xf32>
    %cst = arith.constant dense<0.000000e+00> : vector<8x128xf32>
    %2 = tpu.matmul %0, %1, %cst {dimension_numbers = #tpu.dot_dimension_numbers<[1], [0], [0], [1], [0, 0, 1, 1], [], []>} : vector<8x128xf32>, vector<128x128xf32>, vector<8x128xf32> -> vector<8x128xf32>
    %c0_3 = arith.constant 0 : index
    %c0_4 = arith.constant 0 : index
    %3 = vector.load %arg3[%c0_3, %c0_4] : memref<8x128xf32, #tpu.memory_space<vmem>>, vector<8x128xf32>
    tpu.vector_store %arg3[%c0_3, %c0_4], %2 {strides = array<i32>} : memref<8x128xf32, #tpu.memory_space<vmem>>, vector<8x128xf32>,
    return
  }
  func.func @transform_0(%arg0: i32) -> (i32, i32) {
    %c0_i32 = arith.constant 0 : i32
    %c0_i32_0 = arith.constant 0 : i32
    return %arg0, %c0_i32 : i32, i32
  }
  func.func @transform_1(%arg0: i32) -> (i32, i32) {
    %c0_i32 = arith.constant 0 : i32
    %c0_i32_0 = arith.constant 0 : i32
    %c0_i32_1 = arith.constant 0 : i32
    return %c0_i32, %c0_i32_0 : i32, i32
  }
  func.func @transform_2(%arg0: i32) -> (i32, i32) {
    %c0_i32 = arith.constant 0 : i32
    %c0_i32_0 = arith.constant 0 : i32
    return %arg0, %c0_i32 : i32, i32
  }
}

</mosaic_0001>

<llo_original>
// kernel: tpu_custom_call.1
$region0: #{tpu_custom_call.1}
  #allocation0 [shape = 'u32[]', space=smem, size = 0x4, offset = 0x4, fixed_abs, tag = 'smem constant byte address 0x4 - core index']
  #allocation1 [shape = 'u32[144,128]{1,0:T(1,128)}', space=vmem, size = 0x12000, scoped, tag = 'internal scratch']
  %s0 = inlined_call_operand.hbm [shape: f32[8,128], index: 0, kind: input, shape index: {}]
  %s1 = inlined_call_operand.hbm [shape: f32[128,128], index: 1, kind: input, shape index: {}]
  %s2 = inlined_call_operand.hbm [shape: f32[8,128], index: 2, kind: output, shape index: {}]
  %s3 = sld [smem:[#allocation0]]
  $region26: #{tpu_custom_call.1} parent=0
    _
  %s5 = ssub.s32 1, %s3
  %s6 = scalar_select 0, %s5, %s3
  $region1: #{tpu_custom_call.1} parent=0
    #allocation2 [shape = 'u8[4096]{0}', space=vmem, size = 0x1000, scoped, tag = 'input window, operand 0, single buffered']
    #allocation3 [shape = 's32[1]{0}', space=sflag, size = 0x4, scoped, tag = 'scoped memory for tpu_custom_call.1']
    #allocation4 [shape = 's32[1]{0}', space=sflag, size = 0x4, scoped, tag = 'scoped memory for tpu_custom_call.1']
    #allocation5 [shape = 'u8[65536]{0}', space=vmem, size = 0x10000, scoped, tag = 'input window, operand 1, single buffered']
    #allocation6 [shape = 's32[1]{0}', space=sflag, size = 0x4, scoped, tag = 'scoped memory for tpu_custom_call.1']
    #allocation7 [shape = 'u8[4096]{0}', space=vmem, size = 0x1000, scoped, tag = 'output window, operand 0, single buffered']
    %7 = vsyncpa [#allocation3], 0
    %8 = vsyncpa [#allocation6], 0
    %9 = vsyncpa [#allocation4], 0
    // Predicated region
    $region2: #{tpu_custom_call.1} parent=1 // pred_check
      _
    $region3: #{tpu_custom_call.1} parent=1 // pred_check_branch
      %11 = sbr.rel (0) target = $region5
    $region4: #{tpu_custom_call.1} parent=1 // pred_region
      %s13 = ssub.s32 128, 128
      %14 = vsyncadd [#allocation3], %s13
      %s16 = sshll.u32 [#allocation2], 4
      %s17 = int_to_ptr.vmem [resolvable:$true] %s16
      %19 = dma.hbm_to_vmem [thread:$0]  %s0, 128, %s17, [#allocation3]
    $region5: #{tpu_custom_call.1} parent=1 // pred_fallthru
      _
    // Predicated region
    $region6: #{tpu_custom_call.1} parent=1 // pred_check
      _
    $region7: #{tpu_custom_call.1} parent=1 // pred_check_branch
      %21 = sbr.rel (0) target = $region9
    $region8: #{tpu_custom_call.1} parent=1 // pred_region
      %s23 = ssub.s32 2048, 2048
      %24 = vsyncadd [#allocation6], %s23
      %s25 = sshll.u32 [#allocation5], 4
      %s26 = int_to_ptr.vmem [resolvable:$true] %s25
      %31 = dma.hbm_to_vmem [thread:$0]  %s1, 2048, %s26, [#allocation6], 128, 128, 8
    $region9: #{tpu_custom_call.1} parent=1 // pred_fallthru
      _
    // Predicated region
    $region10: #{tpu_custom_call.1} parent=1 // pred_check
      _
    $region11: #{tpu_custom_call.1} parent=1 // pred_check_branch
      %33 = sbr.rel (0) target = $region13
    $region12: #{tpu_custom_call.1} parent=1 // pred_region
      %34 = dma.done [#allocation3], 128
    $region13: #{tpu_custom_call.1} parent=1 // pred_fallthru
      _
    // Predicated region
    $region14: #{tpu_custom_call.1} parent=1 // pred_check
      _
    $region15: #{tpu_custom_call.1} parent=1 // pred_check_branch
      %36 = sbr.rel (0) target = $region17
    $region16: #{tpu_custom_call.1} parent=1 // pred_region
      %37 = dma.done [#allocation6], 2048
    $region17: #{tpu_custom_call.1} parent=1 // pred_fallthru
      _
    %v38 = vld [vmem:[#allocation2] sm:$0xff]
    %v39 = vld [vmem:[#allocation5] sm:$0xff]
    %v40 = vld [vmem:[#allocation5 + $0x8] sm:$0xff]
    %v41 = vld [vmem:[#allocation5 + $0x10] sm:$0xff]
    %v42 = vld [vmem:[#allocation5 + $0x18] sm:$0xff]
    %v43 = vld [vmem:[#allocation5 + $0x20] sm:$0xff]
    %v44 = vld [vmem:[#allocation5 + $0x28] sm:$0xff]
    %v45 = vld [vmem:[#allocation5 + $0x30] sm:$0xff]
    %v46 = vld [vmem:[#allocation5 + $0x38] sm:$0xff]
    %v47 = vld [vmem:[#allocation5 + $0x40] sm:$0xff]
    %v48 = vld [vmem:[#allocation5 + $0x48] sm:$0xff]
    %v49 = vld [vmem:[#allocation5 + $0x50] sm:$0xff]
    %v50 = vld [vmem:[#allocation5 + $0x58] sm:$0xff]
    %v51 = vld [vmem:[#allocation5 + $0x60] sm:$0xff]
    %v52 = vld [vmem:[#allocation5 + $0x68] sm:$0xff]
    %v53 = vld [vmem:[#allocation5 + $0x70] sm:$0xff]
    %v54 = vld [vmem:[#allocation5 + $0x78] sm:$0xff]
    %55 = vmatprep.subr.mxu0 0.0
    %56 = vmatpush1.msra.mxu0 %v54
    %57 = vmatprep.subr.mxu0 0.0
    %58 = vmatpush1.msra.mxu0 %v53
    %59 = vmatprep.subr.mxu0 0.0
    %60 = vmatpush1.msra.mxu0 %v52
    %61 = vmatprep.subr.mxu0 0.0
    %62 = vmatpush1.msra.mxu0 %v51
    %63 = vmatprep.subr.mxu0 0.0
    %64 = vmatpush1.msra.mxu0 %v50
    %65 = vmatprep.subr.mxu0 0.0
    %66 = vmatpush1.msra.mxu0 %v49
    %67 = vmatprep.subr.mxu0 0.0
    %68 = vmatpush1.msra.mxu0 %v48
    %69 = vmatprep.subr.mxu0 0.0
    %70 = vmatpush1.msra.mxu0 %v47
    %71 = vmatprep.subr.mxu0 0.0
    %72 = vmatpush1.msra.mxu0 %v46
    %73 = vmatprep.subr.mxu0 0.0
    %74 = vmatpush1.msra.mxu0 %v45
    %75 = vmatprep.subr.mxu0 0.0
    %76 = vmatpush1.msra.mxu0 %v44
    %77 = vmatprep.subr.mxu0 0.0
    %78 = vmatpush1.msra.mxu0 %v43
    %79 = vmatprep.subr.mxu0 0.0
    %80 = vmatpush1.msra.mxu0 %v42
    %81 = vmatprep.subr.mxu0 0.0
    %82 = vmatpush1.msra.mxu0 %v41
    %83 = vmatprep.subr.mxu0 0.0
    %84 = vmatpush1.msra.mxu0 %v40
    %85 = vmatprep.subr.mxu0 0.0
    %86 = vmatpush1.msra.mxu0 %v39
    %87 = vmatprep.subr.mxu0 0.0
    %88 = vmatpush2.msra.mxu0 0.0
    %89 = vmatprep.subr.mxu0 0.0
    %90 = vmatpush2.msra.mxu0 0.0
    %91 = vmatprep.subr.mxu0 0.0
    %92 = vmatpush2.msra.mxu0 0.0
    %93 = vmatprep.subr.mxu0 0.0
    %94 = vmatpush2.msra.mxu0 0.0
    %95 = vmatprep.subr.mxu0 0.0
    %96 = vmatpush2.msra.mxu0 0.0
    %97 = vmatprep.subr.mxu0 0.0
    %98 = vmatpush2.msra.mxu0 0.0
    %99 = vmatprep.subr.mxu0 0.0
    %100 = vmatpush2.msra.mxu0 0.0
    %101 = vmatprep.subr.mxu0 0.0
    %102 = vmatpush2.msra.mxu0 0.0
    %103 = vmatprep.subr.mxu0 0.0
    %104 = vmatpush2.msra.mxu0 0.0
    %105 = vmatprep.subr.mxu0 0.0
    %106 = vmatpush2.msra.mxu0 0.0
    %107 = vmatprep.subr.mxu0 0.0
    %108 = vmatpush2.msra.mxu0 0.0
    %109 = vmatprep.subr.mxu0 0.0
    %110 = vmatpush2.msra.mxu0 0.0
    %111 = vmatprep.subr.mxu0 0.0
    %112 = vmatpush2.msra.mxu0 0.0
    %113 = vmatprep.subr.mxu0 0.0
    %114 = vmatpush2.msra.mxu0 0.0
    %115 = vmatprep.subr.mxu0 0.0
    %116 = vmatpush2.msra.mxu0 0.0
    %117 = vmatprep.subr.mxu0 0.0
    %118 = vmatpush2.msra.mxu0 0.0
    %119 = vmatprep.mubr.f32.mxu0 0.0
    %120 = vmatmul.mubr.f32.gmra.mxu0 %v38
    %v121 = vpop.f32.mrf.mxu0
    %v122 = vadd.f32 0.0, %v121
    %v123 = vpop.f32.mrf.mxu0
    %124 = vdwg.mxu0
    %125 = vst [vmem:[#allocation7] sm:$0xff] %v122
    // Predicated region
    $region18: #{tpu_custom_call.1} parent=1 // pred_check
      _
    $region19: #{tpu_custom_call.1} parent=1 // pred_check_branch
      %127 = sbr.rel (0) target = $region21
    $region20: #{tpu_custom_call.1} parent=1 // pred_region
      %s129 = ssub.s32 128, 128
      %130 = vsyncadd [#allocation4], %s129
      %s132 = sshll.u32 [#allocation7], 4
      %s133 = int_to_ptr.vmem [resolvable:$true] %s132
      %135 = dma.vmem_to_hbm [thread:$0]  %s133, 128, %s2, [#allocation4]
    $region21: #{tpu_custom_call.1} parent=1 // pred_fallthru
      _
    // Predicated region
    $region22: #{tpu_custom_call.1} parent=1 // pred_check
      _
    $region23: #{tpu_custom_call.1} parent=1 // pred_check_branch
      %137 = sbr.rel (0) target = $region25
    $region24: #{tpu_custom_call.1} parent=1 // pred_region
      %138 = dma.done [#allocation4], 128
    $region25: #{tpu_custom_call.1} parent=1 // pred_fallthru
      _
    %139 = vsyncpa [#allocation3], 1
    %140 = vsyncpa [#allocation6], 1
    %141 = vsyncpa [#allocation4], 1

</llo_original>
